<compile_context>
chip_gen: v6e
topology: v6e:2x2x1
jax: 0.10.0
libtpu: 0.0.40
codegen_flags: <defaults>
</compile_context>

<pallas_src>
import jax
import jax.numpy as jnp
import numpy as np
from jax import lax
from jax.experimental import pallas as pl
from jax.experimental.pallas import tpu as pltpu


def _round_up(x, m):
    return ((x + m - 1) // m) * m


def _is_v7x():
    try:
        kind = jax.devices()[0].device_kind.lower()
    except Exception:
        return False
    return "v7" in kind


def _attention_kernel(q_ref, k_ref, mrep_ref, sel_ref, bias_ref, o_ref):
    """One batch tile.

    q_ref    : (BT, d)            f32  queries for this batch tile
    k_ref    : (BT, Lk * d)       f32  keys, all Lk keys of a row concatenated on lanes
    mrep_ref : (d, Lk * d)        f32  tile(Wq^T @ Wk, Lk) -- precomputed in the wrapper
    sel_ref  : (Lk * d, Lk)       f32  constant 0/1 segment-sum selector
    bias_ref : (1, Lk)            f32
    o_ref    : (BT, Lk)           f32  scores
    """
    # Lane-replicated projected query: v_rep[b, j*d + e] = (q @ Wq^T @ Wk)[b, e]   (MXU)
    v_rep = lax.dot_general(
        q_ref[...], mrep_ref[...], (((1,), (0,)), ((), ())),
        preferred_element_type=jnp.float32)                       # (BT, Lk*d)

    # Lane-dense elementwise multiply against the lane-flat keys.                  (VPU)
    prod = k_ref[...] * v_rep                                     # (BT, Lk*d)

    # Segmented sums over each key's d lanes via the 0/1 selector matrix.          (MXU)
    scores = lax.dot_general(
        prod, sel_ref[...], (((1,), (0,)), ((), ())),
        preferred_element_type=jnp.float32)                       # (BT, Lk)

    o_ref[...] = (scores + bias_ref[...]).astype(o_ref.dtype)


def attention_forward(q, k, wq, wk, bias, *, block_batch=2048):
    """q: (bs, d) or (bs, 1, d); k: (bs, Lk, d); wq, wk: (d, d) torch (out,in); bias: (Lk,).
    Returns scores.squeeze(1): (bs, Lk)."""
    if q.ndim == 3:
        assert q.shape[1] == 1, "module usage implies a single query per batch element"
        q = q[:, 0, :]
    bs, d = q.shape
    _, lk, dk = k.shape
    assert dk == d and wq.shape == (d, d) and wk.shape == (d, d) and bias.shape == (lk,)

    # Lane-flat key layout (free metadata reshape): dense VMEM blocks, lane-dense DMA.
    k2 = k.reshape(bs, lk * d).astype(jnp.float32)
    q2 = q.astype(jnp.float32)
    bias2 = bias.reshape(1, lk).astype(jnp.float32)

    # Hoisted, grid-invariant weights:
    #   m     = Wq^T @ Wk                               (d, d)
    #   m_rep = [m, m, ..., m]  (Lk copies on lanes)    (d, Lk*d)
    #   sel[j*d + e, j'] = delta(j, j')                 (Lk*d, Lk)
    m = jnp.dot(jnp.swapaxes(wq, 0, 1).astype(jnp.float32), wk.astype(jnp.float32),
                preferred_element_type=jnp.float32)
    m_rep = jnp.tile(m, (1, lk))                                   # (d, lk*d)
    sel = jnp.repeat(jnp.eye(lk, dtype=jnp.float32), d, axis=0)    # (lk*d, lk)

    # Batch tiling: no padding; the final partial block uses masked OOB output stores.
    bt = max(8, min(_round_up(block_batch, 8), _round_up(bs, 8)))
    if _is_v7x():
        # Keep >= 4 grid steps (2 per TensorCore) so both v7x cores get overlap.
        bt = max(8, min(bt, _round_up(pl.cdiv(bs, 4), 8)))
    grid = (pl.cdiv(bs, bt),)

    cost = pl.CostEstimate(
        flops=int(2 * bs * d * (lk * d)        # q @ M_rep
                  + bs * lk * d                # elementwise multiply
                  + 2 * bs * (lk * d) * lk),   # selector matmul
        transcendentals=0,
        bytes_accessed=int(4 * (bs * d + bs * lk * d + d * lk * d
                                + lk * d * lk + lk + bs * lk)),
    )

    out = pl.pallas_call(
        _attention_kernel,
        out_shape=jax.ShapeDtypeStruct((bs, lk), jnp.float32),
        grid_spec=pltpu.PrefetchScalarGridSpec(
            num_scalar_prefetch=0,
            grid=grid,
            in_specs=[
                pl.BlockSpec((bt, d), lambda b: (b, 0)),            # q tile
                pl.BlockSpec((bt, lk * d), lambda b: (b, 0)),       # k tile (lane-flat)
                pl.BlockSpec((d, lk * d), lambda b: (0, 0)),        # M_rep (grid-invariant)
                pl.BlockSpec((lk * d, lk), lambda b: (0, 0)),       # selector (grid-invariant)
                pl.BlockSpec((1, lk), lambda b: (0, 0)),            # bias
            ],
            out_specs=pl.BlockSpec((bt, lk), lambda b: (b, 0)),
        ),
        compiler_params=pltpu.CompilerParams(
            dimension_semantics=("parallel",),      # batch tiles shard across v7x's 2 TCs
            vmem_limit_bytes=32 * 1024 * 1024,      # explicit; usage is only a few MiB
        ),
        cost_estimate=cost,
    )(q2, k2, m_rep, sel, bias2)

    return out


def _reference(q, k, wq, wk, bias):
    if q.ndim == 2:
        q = q[:, None, :]
    qp = jnp.einsum("bld,ed->ble", q, wq)
    kp = jnp.einsum("bld,ed->ble", k, wk)
    scores = jnp.einsum("bqd,bkd->bqk", qp, kp) + bias
    return scores[:, 0, :]


if __name__ == "__main__":
    # Small, module-consistent shapes: d_model=32, k=8 (=> Lk=9), bs=20, Lq=1
    d_model = 32
    kk = 8
    lk = kk + 1
    bs = 20

    key = jax.random.PRNGKey(0)
    k_q, k_k, k_wq, k_wk = jax.random.split(key, 4)
    q = jax.random.normal(k_q, (bs, 1, d_model), dtype=jnp.float32)
    k = jax.random.normal(k_k, (bs, lk, d_model), dtype=jnp.float32)
    # PyTorch Linear weight layout: (out_features, in_features)
    wq = jax.random.normal(k_wq, (d_model, d_model), dtype=jnp.float32) / np.sqrt(d_model)
    wk = jax.random.normal(k_wk, (d_model, d_model), dtype=jnp.float32) / np.sqrt(d_model)
    bias = jnp.zeros((lk,), dtype=jnp.float32)   # module zero-inits the bias

    out = attention_forward(q, k, wq, wk, bias)                        # single (partial) tile
    out_tiled = attention_forward(q, k, wq, wk, bias, block_batch=8)   # 3 tiles, partial last
    out = jax.block_until_ready(out)
    out_tiled = jax.block_until_ready(out_tiled)

    ref = _reference(q, k, wq, wk, bias)
    np.testing.assert_allclose(np.asarray(out), np.asarray(ref), rtol=1e-4, atol=1e-5)
    np.testing.assert_allclose(np.asarray(out_tiled), np.asarray(ref), rtol=1e-4, atol=1e-5)

    print("KERNEL_OK")
</pallas_src>

<mosaic_0001>
module attributes {stable_mosaic.version = 11 : i64} {
  func.func @_attention_kernel(%arg0: i32, %arg1: memref<24x32xf32, #tpu.memory_space<vmem>>, %arg2: memref<24x288xf32, #tpu.memory_space<vmem>>, %arg3: memref<32x288xf32, #tpu.memory_space<vmem>>, %arg4: memref<288x9xf32, #tpu.memory_space<vmem>>, %arg5: memref<1x9xf32, #tpu.memory_space<vmem>>, %arg6: memref<24x9xf32, #tpu.memory_space<vmem>>) attributes {dimension_semantics = [#tpu.dimension_semantics<parallel>], iteration_bounds = array<i64: 1>, scalar_prefetch = 0 : i64, scratch_operands = 0 : i64, tpu.core_type = #tpu.core_type<tc>, window_params = [{transform_indices = @transform_0, window_bounds = array<i64: 24, 32>}, {transform_indices = @transform_1, window_bounds = array<i64: 24, 288>}, {pipeline_mode = #tpu.pipeline_mode<synchronous>, transform_indices = @transform_2, window_bounds = array<i64: 32, 288>}, {pipeline_mode = #tpu.pipeline_mode<synchronous>, transform_indices = @transform_3, window_bounds = array<i64: 288, 9>}, {pipeline_mode = #tpu.pipeline_mode<synchronous>, transform_indices = @transform_4, window_bounds = array<i64: 1, 9>}, {transform_indices = @transform_5, window_bounds = array<i64: 24, 9>}]} {
    %c0 = arith.constant 0 : index
    %c0_0 = arith.constant 0 : index
    %0 = vector.load %arg1[%c0, %c0_0] : memref<24x32xf32, #tpu.memory_space<vmem>>, vector<24x32xf32>
    %c0_1 = arith.constant 0 : index
    %c0_2 = arith.constant 0 : index
    %1 = vector.load %arg3[%c0_1, %c0_2] : memref<32x288xf32, #tpu.memory_space<vmem>>, vector<32x288xf32>
    %cst = arith.constant dense<0.000000e+00> : vector<24x288xf32>
    %2 = tpu.matmul %0, %1, %cst {dimension_numbers = #tpu.dot_dimension_numbers<[1], [0], [0], [1], [0, 0, 1, 1], [], []>} : vector<24x32xf32>, vector<32x288xf32>, vector<24x288xf32> -> vector<24x288xf32>
    %c0_3 = arith.constant 0 : index
    %c0_4 = arith.constant 0 : index
    %3 = vector.load %arg2[%c0_3, %c0_4] : memref<24x288xf32, #tpu.memory_space<vmem>>, vector<24x288xf32>
    %4 = arith.mulf %3, %2 : vector<24x288xf32>
    %c0_5 = arith.constant 0 : index
    %c0_6 = arith.constant 0 : index
    %5 = vector.load %arg4[%c0_5, %c0_6] : memref<288x9xf32, #tpu.memory_space<vmem>>, vector<288x9xf32>
    %cst_7 = arith.constant dense<0.000000e+00> : vector<24x9xf32>
    %6 = tpu.matmul %4, %5, %cst_7 {dimension_numbers = #tpu.dot_dimension_numbers<[1], [0], [0], [1], [0, 0, 1, 1], [], []>} : vector<24x288xf32>, vector<288x9xf32>, vector<24x9xf32> -> vector<24x9xf32>
    %c0_8 = arith.constant 0 : index
    %c0_9 = arith.constant 0 : index
    %7 = vector.load %arg5[%c0_8, %c0_9] : memref<1x9xf32, #tpu.memory_space<vmem>>, vector<1x9xf32>
    %8 = vector.broadcast %7 : vector<1x9xf32> to vector<24x9xf32>
    %9 = arith.addf %6, %8 : vector<24x9xf32>
    %c0_10 = arith.constant 0 : index
    %c0_11 = arith.constant 0 : index
    %10 = vector.load %arg6[%c0_10, %c0_11] : memref<24x9xf32, #tpu.memory_space<vmem>>, vector<24x9xf32>
    tpu.vector_store %arg6[%c0_10, %c0_11], %9 {strides = array<i32>} : memref<24x9xf32, #tpu.memory_space<vmem>>, vector<24x9xf32>,
    return
  }
  func.func @transform_0(%arg0: i32) -> (i32, i32) {
    %c0_i32 = arith.constant 0 : i32
    %c0_i32_0 = arith.constant 0 : i32
    return %arg0, %c0_i32 : i32, i32
  }
  func.func @transform_1(%arg0: i32) -> (i32, i32) {
    %c0_i32 = arith.constant 0 : i32
    %c0_i32_0 = arith.constant 0 : i32
    return %arg0, %c0_i32 : i32, i32
  }
  func.func @transform_2(%arg0: i32) -> (i32, i32) {
    %c0_i32 = arith.constant 0 : i32
    %c0_i32_0 = arith.constant 0 : i32
    %c0_i32_1 = arith.constant 0 : i32
    return %c0_i32, %c0_i32_0 : i32, i32
  }
  func.func @transform_3(%arg0: i32) -> (i32, i32) {
    %c0_i32 = arith.constant 0 : i32
    %c0_i32_0 = arith.constant 0 : i32
    %c0_i32_1 = arith.constant 0 : i32
    return %c0_i32, %c0_i32_0 : i32, i32
  }
  func.func @transform_4(%arg0: i32) -> (i32, i32) {
    %c0_i32 = arith.constant 0 : i32
    %c0_i32_0 = arith.constant 0 : i32
    %c0_i32_1 = arith.constant 0 : i32
    return %c0_i32, %c0_i32_0 : i32, i32
  }
  func.func @transform_5(%arg0: i32) -> (i32, i32) {
    %c0_i32 = arith.constant 0 : i32
    %c0_i32_0 = arith.constant 0 : i32
    return %arg0, %c0_i32 : i32, i32
  }
}

</mosaic_0001>

<llo_original>
// kernel: tpu_custom_call.1
$region0: #{tpu_custom_call.1}
  #allocation0 [shape = 'u32[]', space=smem, size = 0x4, offset = 0x4, fixed_abs, tag = 'smem constant byte address 0x4 - core index']
  #allocation1 [shape = 'u32[144,128]{1,0:T(1,128)}', space=vmem, size = 0x12000, scoped, tag = 'internal scratch']
  %s0 = inlined_call_operand.vmem [shape: f32[20,32], index: 0, kind: input, shape index: {}]
  %s1 = inlined_call_operand.vmem [shape: f32[20,288], index: 1, kind: input, shape index: {}]
  %s2 = inlined_call_operand.vmem [shape: f32[32,288], index: 2, kind: input, shape index: {}]
  %s3 = inlined_call_operand.vmem [shape: f32[288,9], index: 3, kind: input, shape index: {}]
  %s4 = inlined_call_operand.vmem [shape: f32[1,9], index: 4, kind: input, shape index: {}]
  %s5 = inlined_call_operand.vmem [shape: f32[20,9], index: 5, kind: output, shape index: {}]
  %s6 = sld [smem:[#allocation0]]
  $region30: #{tpu_custom_call.1} parent=0
    _
  %s8 = ssub.s32 1, %s6
  %s9 = scalar_select 0, %s8, %s6
  // Predicated region
  $region2: #{tpu_custom_call.1} parent=0 // pred_check
    _
  $region3: #{tpu_custom_call.1} parent=0 // pred_check_branch
    %11 = sbr.rel (0) target = $region5
  $region4: #{tpu_custom_call.1} parent=0 // pred_region
    _
  $region5: #{tpu_custom_call.1} parent=0 // pred_fallthru
    _
  // Predicated region
  $region6: #{tpu_custom_call.1} parent=0 // pred_check
    _
  $region7: #{tpu_custom_call.1} parent=0 // pred_check_branch
    %13 = sbr.rel (0) target = $region9
  $region8: #{tpu_custom_call.1} parent=0 // pred_region
    _
  $region9: #{tpu_custom_call.1} parent=0 // pred_fallthru
    _
  // Predicated region
  $region10: #{tpu_custom_call.1} parent=0 // pred_check
    _
  $region11: #{tpu_custom_call.1} parent=0 // pred_check_branch
    %15 = sbr.rel (0) target = $region13
  $region12: #{tpu_custom_call.1} parent=0 // pred_region
    _
  $region13: #{tpu_custom_call.1} parent=0 // pred_fallthru
    _
  // Predicated region
  $region14: #{tpu_custom_call.1} parent=0 // pred_check
    _
  $region15: #{tpu_custom_call.1} parent=0 // pred_check_branch
    %17 = sbr.rel (0) target = $region17
  $region16: #{tpu_custom_call.1} parent=0 // pred_region
    _
  $region17: #{tpu_custom_call.1} parent=0 // pred_fallthru
    _
  // Predicated region
  $region18: #{tpu_custom_call.1} parent=0 // pred_check
    _
  $region19: #{tpu_custom_call.1} parent=0 // pred_check_branch
    %19 = sbr.rel (0) target = $region21
  $region20: #{tpu_custom_call.1} parent=0 // pred_region
    _
  $region21: #{tpu_custom_call.1} parent=0 // pred_fallthru
    _
  %v20 = vld [vmem:[%s0] sm:$0xff]
  %v21 = vld [vmem:[%s0 + $0x8] sm:$0xff]
  %v22 = vld [vmem:[%s0 + $0x10] sm:$0xff]
  %v23 = vld [vmem:[%s2] sm:$0xff]
  %v24 = vld [vmem:[%s2 + $0x8] sm:$0xff]
  %v25 = vld [vmem:[%s2 + $0x10] sm:$0xff]
  %v26 = vld [vmem:[%s2 + $0x18] sm:$0xff]
  %v27 = vld [vmem:[%s2 + $0x20] sm:$0xff]
  %v28 = vld [vmem:[%s2 + $0x28] sm:$0xff]
  %v29 = vld [vmem:[%s2 + $0x30] sm:$0xff]
  %v30 = vld [vmem:[%s2 + $0x38] sm:$0xff]
  %v31 = vld [vmem:[%s2 + $0x40] sm:$0xff]
  %v32 = vld [vmem:[%s2 + $0x48] sm:$0xff]
  %v33 = vld [vmem:[%s2 + $0x50] sm:$0xff]
  %v34 = vld [vmem:[%s2 + $0x58] sm:$0xff]
  %vm35 = vcmask 261120
  %v37 = vsel %vm35, %v20, 0
  %v40 = vsel %vm35, %v21, 0
  %v43 = vsel %vm35, %v22, 0
  %45 = vmatprep.subr.mxu0 0.0
  %46 = vmatpush1.msra.mxu0 0.0
  %47 = vmatprep.subr.mxu0 0.0
  %48 = vmatpush1.msra.mxu0 0.0
  %49 = vmatprep.subr.mxu0 0.0
  %50 = vmatpush1.msra.mxu0 0.0
  %51 = vmatprep.subr.mxu0 0.0
  %52 = vmatpush1.msra.mxu0 0.0
  %53 = vmatprep.subr.mxu0 0.0
  %54 = vmatpush1.msra.mxu0 0.0
  %55 = vmatprep.subr.mxu0 0.0
  %56 = vmatpush1.msra.mxu0 0.0
  %57 = vmatprep.subr.mxu0 0.0
  %58 = vmatpush1.msra.mxu0 0.0
  %59 = vmatprep.subr.mxu0 0.0
  %60 = vmatpush1.msra.mxu0 0.0
  %61 = vmatprep.subr.mxu0 0.0
  %62 = vmatpush1.msra.mxu0 0.0
  %63 = vmatprep.subr.mxu0 0.0
  %64 = vmatpush1.msra.mxu0 0.0
  %65 = vmatprep.subr.mxu0 0.0
  %66 = vmatpush1.msra.mxu0 0.0
  %67 = vmatprep.subr.mxu0 0.0
  %68 = vmatpush1.msra.mxu0 0.0
  %69 = vmatprep.subr.mxu0 %v33
  %70 = vmatpush1.msra.mxu0 %v32
  %71 = vmatprep.subr.mxu0 %v30
  %72 = vmatpush1.msra.mxu0 %v29
  %73 = vmatprep.subr.mxu0 %v27
  %74 = vmatpush1.msra.mxu0 %v26
  %75 = vmatprep.subr.mxu0 %v24
  %76 = vmatpush1.msra.mxu0 %v23
  %77 = vmatprep.subr.mxu0 0.0
  %78 = vmatpush2.msra.mxu0 0.0
  %79 = vmatprep.subr.mxu0 0.0
  %80 = vmatpush2.msra.mxu0 0.0
  %81 = vmatprep.subr.mxu0 0.0
  %82 = vmatpush2.msra.mxu0 0.0
  %83 = vmatprep.subr.mxu0 0.0
  %84 = vmatpush2.msra.mxu0 0.0
  %85 = vmatprep.subr.mxu0 0.0
  %86 = vmatpush2.msra.mxu0 0.0
  %87 = vmatprep.subr.mxu0 0.0
  %88 = vmatpush2.msra.mxu0 0.0
  %89 = vmatprep.subr.mxu0 0.0
  %90 = vmatpush2.msra.mxu0 0.0
  %91 = vmatprep.subr.mxu0 0.0
  %92 = vmatpush2.msra.mxu0 0.0
  %93 = vmatprep.subr.mxu0 0.0
  %94 = vmatpush2.msra.mxu0 0.0
  %95 = vmatprep.subr.mxu0 0.0
  %96 = vmatpush2.msra.mxu0 0.0
  %97 = vmatprep.subr.mxu0 0.0
  %98 = vmatpush2.msra.mxu0 0.0
  %99 = vmatprep.subr.mxu0 0.0
  %100 = vmatpush2.msra.mxu0 0.0
  %101 = vmatprep.subr.mxu0 0.0
  %102 = vmatpush2.msra.mxu0 0.0
  %103 = vmatprep.subr.mxu0 0.0
  %104 = vmatpush2.msra.mxu0 0.0
  %105 = vmatprep.subr.mxu0 0.0
  %106 = vmatpush2.msra.mxu0 0.0
  %107 = vmatprep.subr.mxu0 0.0
  %108 = vmatpush2.msra.mxu0 0.0
  %109 = vmatprep.mubr.f32.mxu0 0.0
  %110 = vmatmul.mubr.f32.gmra.mxu0 %v37
  %v111 = vpop.f32.mrf.mxu0
  %v112 = vadd.f32 0.0, %v111
  %v113 = vpop.f32.mrf.mxu0
  %v114 = vadd.f32 0.0, %v113
  %115 = vmatprep.mubr.f32.mxu0 0.0
  %116 = vmatmul.mubr.f32.gmra.mxu0 %v40
  %v117 = vpop.f32.mrf.mxu0
  %v118 = vadd.f32 0.0, %v117
  %v119 = vpop.f32.mrf.mxu0
  %v120 = vadd.f32 0.0, %v119
  %121 = vmatprep.mubr.f32.mxu0 0.0
  %122 = vmatmul.mubr.f32.gmra.mxu0 %v43
  %v123 = vpop.f32.mrf.mxu0
  %v124 = vadd.f32 0.0, %v123
  %v125 = vpop.f32.mrf.mxu0
  %v126 = vadd.f32 0.0, %v125
  %127 = vdwg.mxu0
  %128 = vmatprep.subr.mxu0 0.0
  %129 = vmatpush1.msra.mxu0 0.0
  %130 = vmatprep.subr.mxu0 0.0
  %131 = vmatpush1.msra.mxu0 0.0
  %132 = vmatprep.subr.mxu0 0.0
  %133 = vmatpush1.msra.mxu0 0.0
  %134 = vmatprep.subr.mxu0 0.0
  %135 = vmatpush1.msra.mxu0 0.0
  %136 = vmatprep.subr.mxu0 0.0
  %137 = vmatpush1.msra.mxu0 0.0
  %138 = vmatprep.subr.mxu0 0.0
  %139 = vmatpush1.msra.mxu0 0.0
  %140 = vmatprep.subr.mxu0 0.0
  %141 = vmatpush1.msra.mxu0 0.0
  %142 = vmatprep.subr.mxu0 0.0
  %143 = vmatpush1.msra.mxu0 0.0
  %144 = vmatprep.subr.mxu0 0.0
  %145 = vmatpush1.msra.mxu0 0.0
  %146 = vmatprep.subr.mxu0 0.0
  %147 = vmatpush1.msra.mxu0 0.0
  %148 = vmatprep.subr.mxu0 0.0
  %149 = vmatpush1.msra.mxu0 0.0
  %150 = vmatprep.subr.mxu0 0.0
  %151 = vmatpush1.msra.mxu0 0.0
  %152 = vmatprep.subr.mxu0 0.0
  %153 = vmatpush1.msra.mxu0 %v34
  %154 = vmatprep.subr.mxu0 0.0
  %155 = vmatpush1.msra.mxu0 %v31
  %156 = vmatprep.subr.mxu0 0.0
  %157 = vmatpush1.msra.mxu0 %v28
  %158 = vmatprep.subr.mxu0 0.0
  %159 = vmatpush1.msra.mxu0 %v25
  %160 = vmatprep.subr.mxu0 0.0
  %161 = vmatpush2.msra.mxu0 0.0
  %162 = vmatprep.subr.mxu0 0.0
  %163 = vmatpush2.msra.mxu0 0.0
  %164 = vmatprep.subr.mxu0 0.0
  %165 = vmatpush2.msra.mxu0 0.0
  %166 = vmatprep.subr.mxu0 0.0
  %167 = vmatpush2.msra.mxu0 0.0
  %168 = vmatprep.subr.mxu0 0.0
  %169 = vmatpush2.msra.mxu0 0.0
  %170 = vmatprep.subr.mxu0 0.0
  %171 = vmatpush2.msra.mxu0 0.0
  %172 = vmatprep.subr.mxu0 0.0
  %173 = vmatpush2.msra.mxu0 0.0
  %174 = vmatprep.subr.mxu0 0.0
  %175 = vmatpush2.msra.mxu0 0.0
  %176 = vmatprep.subr.mxu0 0.0
  %177 = vmatpush2.msra.mxu0 0.0
  %178 = vmatprep.subr.mxu0 0.0
  %179 = vmatpush2.msra.mxu0 0.0
  %180 = vmatprep.subr.mxu0 0.0
  %181 = vmatpush2.msra.mxu0 0.0
  %182 = vmatprep.subr.mxu0 0.0
  %183 = vmatpush2.msra.mxu0 0.0
  %184 = vmatprep.subr.mxu0 0.0
  %185 = vmatpush2.msra.mxu0 0.0
  %186 = vmatprep.subr.mxu0 0.0
  %187 = vmatpush2.msra.mxu0 0.0
  %188 = vmatprep.subr.mxu0 0.0
  %189 = vmatpush2.msra.mxu0 0.0
  %190 = vmatprep.subr.mxu0 0.0
  %191 = vmatpush2.msra.mxu0 0.0
  %192 = vmatprep.mubr.f32.mxu0 0.0
  %193 = vmatmul.mubr.f32.gmra.mxu0 %v37
  %v194 = vpop.f32.mrf.mxu0
  %v195 = vadd.f32 0.0, %v194
  %v196 = vpop.f32.mrf.mxu0
  %197 = vmatprep.mubr.f32.mxu0 0.0
  %198 = vmatmul.mubr.f32.gmra.mxu0 %v40
  %v199 = vpop.f32.mrf.mxu0
  %v200 = vadd.f32 0.0, %v199
  %v201 = vpop.f32.mrf.mxu0
  %202 = vmatprep.mubr.f32.mxu0 0.0
  %203 = vmatmul.mubr.f32.gmra.mxu0 %v43
  %v204 = vpop.f32.mrf.mxu0
  %v205 = vadd.f32 0.0, %v204
  %v206 = vpop.f32.mrf.mxu0
  %207 = vdwg.mxu0
  %v208 = vld [vmem:[%s1] sm:$0xff]
  %v209 = vld [vmem:[%s1 + $0x8] sm:$0xff]
  %v210 = vld [vmem:[%s1 + $0x10] sm:$0xff]
  %v211 = vld [vmem:[%s1 + $0x18] sm:$0xff]
  %v212 = vld [vmem:[%s1 + $0x20] sm:$0xff]
  %v213 = vld [vmem:[%s1 + $0x28] sm:$0xff]
  %v214 = vld [vmem:[%s1 + $0x30] sm:$0xff]
  %v215 = vld [vmem:[%s1 + $0x38] sm:$0xff]
  %v216 = vld [vmem:[%s1 + $0x40] sm:$0xff]
  %v217 = vmul.f32 %v208, %v112
  %v218 = vmul.f32 %v209, %v114
  %v219 = vmul.f32 %v210, %v195
  %v220 = vmul.f32 %v211, %v118
  %v221 = vmul.f32 %v212, %v120
  %v222 = vmul.f32 %v213, %v200
  %v223 = vmul.f32 %v214, %v124
  %v224 = vmul.f32 %v215, %v126
  %v225 = vmul.f32 %v216, %v205
  %v226 = vld [vmem:[%s3] sm:$0xff]
  %v227 = vld [vmem:[%s3 + $0x8] sm:$0xff]
  %v228 = vld [vmem:[%s3 + $0x10] sm:$0xff]
  %v229 = vld [vmem:[%s3 + $0x18] sm:$0xff]
  %v230 = vld [vmem:[%s3 + $0x20] sm:$0xff]
  %v231 = vld [vmem:[%s3 + $0x28] sm:$0xff]
  %v232 = vld [vmem:[%s3 + $0x30] sm:$0xff]
  %v233 = vld [vmem:[%s3 + $0x38] sm:$0xff]
  %v234 = vld [vmem:[%s3 + $0x40] sm:$0xff]
  %v235 = vld [vmem:[%s3 + $0x48] sm:$0xff]
  %v236 = vld [vmem:[%s3 + $0x50] sm:$0xff]
  %v237 = vld [vmem:[%s3 + $0x58] sm:$0xff]
  %v238 = vld [vmem:[%s3 + $0x60] sm:$0xff]
  %v239 = vld [vmem:[%s3 + $0x68] sm:$0xff]
  %v240 = vld [vmem:[%s3 + $0x70] sm:$0xff]
  %v241 = vld [vmem:[%s3 + $0x78] sm:$0xff]
  %v242 = vld [vmem:[%s3 + $0x80] sm:$0xff]
  %v243 = vld [vmem:[%s3 + $0x88] sm:$0xff]
  %v244 = vld [vmem:[%s3 + $0x90] sm:$0xff]
  %v245 = vld [vmem:[%s3 + $0x98] sm:$0xff]
  %v246 = vld [vmem:[%s3 + $0xa0] sm:$0xff]
  %v247 = vld [vmem:[%s3 + $0xa8] sm:$0xff]
  %v248 = vld [vmem:[%s3 + $0xb0] sm:$0xff]
  %v249 = vld [vmem:[%s3 + $0xb8] sm:$0xff]
  %v250 = vld [vmem:[%s3 + $0xc0] sm:$0xff]
  %v251 = vld [vmem:[%s3 + $0xc8] sm:$0xff]
  %v252 = vld [vmem:[%s3 + $0xd0] sm:$0xff]
  %v253 = vld [vmem:[%s3 + $0xd8] sm:$0xff]
  %v254 = vld [vmem:[%s3 + $0xe0] sm:$0xff]
  %v255 = vld [vmem:[%s3 + $0xe8] sm:$0xff]
  %v256 = vld [vmem:[%s3 + $0xf0] sm:$0xff]
  %v257 = vld [vmem:[%s3 + $0xf8] sm:$0xff]
  %v258 = vld [vmem:[%s3 + $0x100] sm:$0xff]
  %v259 = vld [vmem:[%s3 + $0x108] sm:$0xff]
  %v260 = vld [vmem:[%s3 + $0x110] sm:$0xff]
  %v261 = vld [vmem:[%s3 + $0x118] sm:$0xff]
  %v262 = vld [vmem:[%s4] sm:$0x1]
  %v264 = vlaneseq
  %v265 = vshrl.u32 %v264, 7
  %v266 = vsub.s32 0, %v265
  %v267 = vrot.slane %v262, %v266
  %v270 = vsel %vm35, %v219, 0
  %v273 = vsel %vm35, %v222, 0
  %v276 = vsel %vm35, %v225, 0
  %278 = vmatprep.subr.mxu0 0.0
  %279 = vmatpush1.msra.mxu0 %v241
  %280 = vmatprep.subr.mxu0 0.0
  %281 = vmatpush1.msra.mxu0 %v240
  %282 = vmatprep.subr.mxu0 0.0
  %283 = vmatpush1.msra.mxu0 %v239
  %284 = vmatprep.subr.mxu0 0.0
  %285 = vmatpush1.msra.mxu0 %v238
  %286 = vmatprep.subr.mxu0 0.0
  %287 = vmatpush1.msra.mxu0 %v237
  %288 = vmatprep.subr.mxu0 0.0
  %289 = vmatpush1.msra.mxu0 %v236
  %290 = vmatprep.subr.mxu0 0.0
  %291 = vmatpush1.msra.mxu0 %v235
  %292 = vmatprep.subr.mxu0 0.0
  %293 = vmatpush1.msra.mxu0 %v234
  %294 = vmatprep.subr.mxu0 0.0
  %295 = vmatpush1.msra.mxu0 %v233
  %296 = vmatprep.subr.mxu0 0.0
  %297 = vmatpush1.msra.mxu0 %v232
  %298 = vmatprep.subr.mxu0 0.0
  %299 = vmatpush1.msra.mxu0 %v231
  %300 = vmatprep.subr.mxu0 0.0
  %301 = vmatpush1.msra.mxu0 %v230
  %302 = vmatprep.subr.mxu0 0.0
  %303 = vmatpush1.msra.mxu0 %v229
  %304 = vmatprep.subr.mxu0 0.0
  %305 = vmatpush1.msra.mxu0 %v228
  %306 = vmatprep.subr.mxu0 0.0
  %307 = vmatpush1.msra.mxu0 %v227
  %308 = vmatprep.subr.mxu0 0.0
  %309 = vmatpush1.msra.mxu0 %v226
  %310 = vmatprep.subr.mxu0 0.0
  %311 = vmatpush2.msra.mxu0 %v257
  %312 = vmatprep.subr.mxu0 0.0
  %313 = vmatpush2.msra.mxu0 %v256
  %314 = vmatprep.subr.mxu0 0.0
  %315 = vmatpush2.msra.mxu0 %v255
  %316 = vmatprep.subr.mxu0 0.0
  %317 = vmatpush2.msra.mxu0 %v254
  %318 = vmatprep.subr.mxu0 0.0
  %319 = vmatpush2.msra.mxu0 %v253
  %320 = vmatprep.subr.mxu0 0.0
  %321 = vmatpush2.msra.mxu0 %v252
  %322 = vmatprep.subr.mxu0 0.0
  %323 = vmatpush2.msra.mxu0 %v251
  %324 = vmatprep.subr.mxu0 0.0
  %325 = vmatpush2.msra.mxu0 %v250
  %326 = vmatprep.subr.mxu0 0.0
  %327 = vmatpush2.msra.mxu0 %v249
  %328 = vmatprep.subr.mxu0 0.0
  %329 = vmatpush2.msra.mxu0 %v248
  %330 = vmatprep.subr.mxu0 0.0
  %331 = vmatpush2.msra.mxu0 %v247
  %332 = vmatprep.subr.mxu0 0.0
  %333 = vmatpush2.msra.mxu0 %v246
  %334 = vmatprep.subr.mxu0 0.0
  %335 = vmatpush2.msra.mxu0 %v245
  %336 = vmatprep.subr.mxu0 0.0
  %337 = vmatpush2.msra.mxu0 %v244
  %338 = vmatprep.subr.mxu0 0.0
  %339 = vmatpush2.msra.mxu0 %v243
  %340 = vmatprep.subr.mxu0 0.0
  %341 = vmatpush2.msra.mxu0 %v242
  %342 = vmatprep.mubr.f32.mxu0 %v218
  %343 = vmatmul.mubr.f32.gmra.mxu0 %v217
  %v344 = vpop.f32.mrf.mxu0
  %v345 = vadd.f32 %v267, %v344
  %v346 = vpop.f32.mrf.mxu0
  %347 = vmatprep.mubr.f32.mxu0 %v221
  %348 = vmatmul.mubr.f32.gmra.mxu0 %v220
  %v349 = vpop.f32.mrf.mxu0
  %v350 = vadd.f32 %v267, %v349
  %v351 = vpop.f32.mrf.mxu0
  %352 = vmatprep.mubr.f32.mxu0 %v224
  %353 = vmatmul.mubr.f32.gmra.mxu0 %v223
  %v354 = vpop.f32.mrf.mxu0
  %v355 = vadd.f32 %v267, %v354
  %v356 = vpop.f32.mrf.mxu0
  %357 = vdwg.mxu0
  %358 = vmatprep.subr.mxu0 0.0
  %359 = vmatpush1.msra.mxu0 0.0
  %360 = vmatprep.subr.mxu0 0.0
  %361 = vmatpush1.msra.mxu0 0.0
  %362 = vmatprep.subr.mxu0 0.0
  %363 = vmatpush1.msra.mxu0 0.0
  %364 = vmatprep.subr.mxu0 0.0
  %365 = vmatpush1.msra.mxu0 0.0
  %366 = vmatprep.subr.mxu0 0.0
  %367 = vmatpush1.msra.mxu0 0.0
  %368 = vmatprep.subr.mxu0 0.0
  %369 = vmatpush1.msra.mxu0 0.0
  %370 = vmatprep.subr.mxu0 0.0
  %371 = vmatpush1.msra.mxu0 0.0
  %372 = vmatprep.subr.mxu0 0.0
  %373 = vmatpush1.msra.mxu0 0.0
  %374 = vmatprep.subr.mxu0 0.0
  %375 = vmatpush1.msra.mxu0 0.0
  %376 = vmatprep.subr.mxu0 0.0
  %377 = vmatpush1.msra.mxu0 0.0
  %378 = vmatprep.subr.mxu0 0.0
  %379 = vmatpush1.msra.mxu0 0.0
  %380 = vmatprep.subr.mxu0 0.0
  %381 = vmatpush1.msra.mxu0 0.0
  %382 = vmatprep.subr.mxu0 0.0
  %383 = vmatpush1.msra.mxu0 %v261
  %384 = vmatprep.subr.mxu0 0.0
  %385 = vmatpush1.msra.mxu0 %v260
  %386 = vmatprep.subr.mxu0 0.0
  %387 = vmatpush1.msra.mxu0 %v259
  %388 = vmatprep.subr.mxu0 0.0
  %389 = vmatpush1.msra.mxu0 %v258
  %390 = vmatprep.subr.mxu0 0.0
  %391 = vmatpush2.msra.mxu0 0.0
  %392 = vmatprep.subr.mxu0 0.0
  %393 = vmatpush2.msra.mxu0 0.0
  %394 = vmatprep.subr.mxu0 0.0
  %395 = vmatpush2.msra.mxu0 0.0
  %396 = vmatprep.subr.mxu0 0.0
  %397 = vmatpush2.msra.mxu0 0.0
  %398 = vmatprep.subr.mxu0 0.0
  %399 = vmatpush2.msra.mxu0 0.0
  %400 = vmatprep.subr.mxu0 0.0
  %401 = vmatpush2.msra.mxu0 0.0
  %402 = vmatprep.subr.mxu0 0.0
  %403 = vmatpush2.msra.mxu0 0.0
  %404 = vmatprep.subr.mxu0 0.0
  %405 = vmatpush2.msra.mxu0 0.0
  %406 = vmatprep.subr.mxu0 0.0
  %407 = vmatpush2.msra.mxu0 0.0
  %408 = vmatprep.subr.mxu0 0.0
  %409 = vmatpush2.msra.mxu0 0.0
  %410 = vmatprep.subr.mxu0 0.0
  %411 = vmatpush2.msra.mxu0 0.0
  %412 = vmatprep.subr.mxu0 0.0
  %413 = vmatpush2.msra.mxu0 0.0
  %414 = vmatprep.subr.mxu0 0.0
  %415 = vmatpush2.msra.mxu0 0.0
  %416 = vmatprep.subr.mxu0 0.0
  %417 = vmatpush2.msra.mxu0 0.0
  %418 = vmatprep.subr.mxu0 0.0
  %419 = vmatpush2.msra.mxu0 0.0
  %420 = vmatprep.subr.mxu0 0.0
  %421 = vmatpush2.msra.mxu0 0.0
  %422 = vmatprep.mubr.f32.mxu0 0.0
  %423 = vmatmul.mubr.f32.gmra.mxu0 %v270
  %v424 = vpop.f32.mrf.mxu0
  %v425 = vadd.f32 %v345, %v424
  %v426 = vpop.f32.mrf.mxu0
  %427 = vmatprep.mubr.f32.mxu0 0.0
  %428 = vmatmul.mubr.f32.gmra.mxu0 %v273
  %v429 = vpop.f32.mrf.mxu0
  %v430 = vadd.f32 %v350, %v429
  %v431 = vpop.f32.mrf.mxu0
  %432 = vmatprep.mubr.f32.mxu0 0.0
  %433 = vmatmul.mubr.f32.gmra.mxu0 %v276
  %v434 = vpop.f32.mrf.mxu0
  %v435 = vadd.f32 %v355, %v434
  %v436 = vpop.f32.mrf.mxu0
  %437 = vdwg.mxu0
  %vm438 = vcmask 72704
  %439 = vst.msk [vmem:[%s5] sm:$0xff] %vm438, %v425
  %440 = vst.msk [vmem:[%s5 + $0x8] sm:$0xff] %vm438, %v430
  %441 = vst.msk [vmem:[%s5 + $0x10] sm:$0xff] %vm438, %v435
  // Predicated region
  $region22: #{tpu_custom_call.1} parent=0 // pred_check
    _
  $region23: #{tpu_custom_call.1} parent=0 // pred_check_branch
    %443 = sbr.rel (0) target = $region25
  $region24: #{tpu_custom_call.1} parent=0 // pred_region
    _
  $region25: #{tpu_custom_call.1} parent=0 // pred_fallthru
    _
  // Predicated region
  $region26: #{tpu_custom_call.1} parent=0 // pred_check
    _
  $region27: #{tpu_custom_call.1} parent=0 // pred_check_branch
    %445 = sbr.rel (0) target = $region29
  $region28: #{tpu_custom_call.1} parent=0 // pred_region
    _
  $region29: #{tpu_custom_call.1} parent=0 // pred_fallthru
    _

</llo_original>
